<compile_context>
chip_gen: v7x
topology: tpu7x:2x2x1
jax: 0.10.0
libtpu: 0.0.40
codegen_flags: <defaults>
</compile_context>

<pallas_src>
import jax
import jax.numpy as jnp
from jax.experimental import pallas as pl
from jax.experimental.pallas import tpu as pltpu


def _cdiv(a, b):
    return -(-a // b)


def _round_up(x, m):
    return _cdiv(x, m) * m


# ----------------------------- kernels ------------------------------------ #

def _linear_resident_kernel(x_ref, w_ref, b_ref, o_ref):
    """Fast path: whole weight resident in VMEM, single dot + bias per tile."""
    o_ref[...] = (jnp.dot(x_ref[...].astype(jnp.bfloat16), w_ref[...],
                          preferred_element_type=jnp.float32)
                  + b_ref[...])


def _linear_tiled_kernel(x_ref, w_ref, b_ref, o_ref):
    """K-tiled path: accumulate straight into the VMEM-resident output block.

    Bias is folded into the k==0 write, so there is no accumulator scratch,
    no epilogue copy and no separate bias add.
    """
    k = pl.program_id(2)
    part = jnp.dot(x_ref[...].astype(jnp.bfloat16), w_ref[...],
                   preferred_element_type=jnp.float32)

    @pl.when(k == 0)
    def _init():
        o_ref[...] = b_ref[...] + part

    @pl.when(k != 0)
    def _acc():
        o_ref[...] += part


# ----------------------------- planning ----------------------------------- #

def _make_plan(M, K, N, *, tm_max=512, tn_max=512, tk_max=1024,
               vmem_budget_bytes=16 * 1024 * 1024):
    """Static tiling plan. All inputs are Python ints (shapes are static)."""
    Kp_full = _round_up(K, 128)
    Np_full = _round_up(N, 128)

    def m_blocks(align):
        # Balanced M tiles (minimal padding); prefer >=2 blocks so the
        # "parallel" M axis shards across v7x's two TensorCores.
        nbm = _cdiv(M, tm_max)
        if nbm == 1 and M >= 2 * align:
            nbm = 2
        tm = _round_up(_cdiv(M, nbm), align)
        return tm, tm * nbm, nbm

    # --- resident-weight fast path -----------------------------------------
    tm, Mp, _ = m_blocks(8)                     # x stays f32 -> 8-row sublanes
    fast_bytes = 2 * (tm * Kp_full * 4          # x tile (f32), double-buffered
                      + Kp_full * Np_full * 2   # weight (bf16)
                      + Np_full * 4             # bias (f32)
                      + tm * Np_full * 4)       # out tile (f32)
    if fast_bytes <= vmem_budget_bytes:
        return dict(fast=True, tm=tm, Mp=Mp, Kp=Kp_full, Np=Np_full,
                    x_bf16=False)

    # --- K-tiled fallback ----------------------------------------------------
    nbn = _cdiv(N, tn_max)
    tn = _round_up(_cdiv(N, nbn), 128)
    Np = tn * nbn
    nbk = _cdiv(K, tk_max)
    tk = _round_up(_cdiv(K, nbk), 128)
    Kp = tk * nbk
    # Pre-cast x to bf16 only when its tiles are re-read across N blocks;
    # otherwise the external cast would cost an extra HBM pass.
    x_bf16 = nbn > 1
    tm, Mp, _ = m_blocks(16 if x_bf16 else 8)
    return dict(fast=False, tm=tm, tn=tn, tk=tk, Mp=Mp, Kp=Kp, Np=Np,
                x_bf16=x_bf16)


def _build_forward(M, K, N, plan):
    """Returns a jitted forward(in_data, w_pad, b_pad) -> (M, N) f32."""
    Mp, Kp, Np = plan["Mp"], plan["Kp"], plan["Np"]
    tm = plan["tm"]

    if plan["fast"]:
        pcall = pl.pallas_call(
            _linear_resident_kernel,
            out_shape=jax.ShapeDtypeStruct((Mp, Np), jnp.float32),
            grid=(Mp // tm,),
            in_specs=[
                pl.BlockSpec((tm, Kp), lambda i: (i, 0)),    # activations
                pl.BlockSpec((Kp, Np), lambda i: (0, 0)),    # resident weight
                pl.BlockSpec((1, Np), lambda i: (0, 0)),     # resident bias
            ],
            out_specs=pl.BlockSpec((tm, Np), lambda i: (i, 0)),
            compiler_params=pltpu.CompilerParams(
                dimension_semantics=("parallel",)),
        )
    else:
        tn, tk = plan["tn"], plan["tk"]
        pcall = pl.pallas_call(
            _linear_tiled_kernel,
            out_shape=jax.ShapeDtypeStruct((Mp, Np), jnp.float32),
            grid=(Mp // tm, Np // tn, Kp // tk),
            in_specs=[
                pl.BlockSpec((tm, tk), lambda i, j, k: (i, k)),  # activations
                pl.BlockSpec((tk, tn), lambda i, j, k: (k, j)),  # weights
                pl.BlockSpec((1, tn), lambda i, j, k: (0, j)),   # bias (K-res.)
            ],
            out_specs=pl.BlockSpec((tm, tn), lambda i, j, k: (i, j)),
            compiler_params=pltpu.CompilerParams(
                dimension_semantics=("parallel", "parallel", "arbitrary")),
        )

    x_bf16 = plan["x_bf16"]

    def forward(in_data, w_pad, b_pad):
        # torch `.view(*base_model_input_size)` -> jnp.reshape (glue, fused).
        x2d = jnp.reshape(in_data, (M, K))
        if x_bf16:
            x2d = x2d.astype(jnp.bfloat16)
        if (Mp, Kp) != (M, K):
            x2d = jnp.pad(x2d, ((0, Mp - M), (0, Kp - K)))
        out = pcall(x2d, w_pad, b_pad)
        if (Mp, Np) != (M, N):
            out = out[:M, :N]
        return out

    return jax.jit(forward)


# ----------------------------- module wrapper ------------------------------ #

class BaseModelWrapperPallas:
    """JAX/Pallas equivalent of BaseModelWrapper(base_model=Linear, size)."""

    def __init__(self, base_model_input_size, out_features, key,
                 **plan_overrides):
        # TODO(synk): the PyTorch wrapper accepts an arbitrary injected
        # base_model; here we instantiate a concrete Linear base model.
        self.base_model_input_size = tuple(base_model_input_size)
        M, K = self.base_model_input_size
        N = out_features
        kw, kb = jax.random.split(key)
        # Weights pre-transposed ([K, N]) and stored bf16 (MXU operand dtype);
        # bias kept f32 (epilogue / accumulation dtype).
        self.w = (jax.random.normal(kw, (K, N), jnp.float32)
                  / jnp.sqrt(jnp.float32(K))).astype(jnp.bfloat16)
        self.b = jax.random.normal(kb, (1, N), jnp.float32) * 0.01

        plan = _make_plan(M, K, N, **plan_overrides)
        self.plan = plan
        Kp, Np = plan["Kp"], plan["Np"]
        # Shapes are static: pad weights/bias ONCE at init, not per forward.
        self.w_pad = (jnp.pad(self.w, ((0, Kp - K), (0, Np - N)))
                      if (Kp, Np) != (K, N) else self.w)
        self.b_pad = (jnp.pad(self.b, ((0, 0), (0, Np - N)))
                      if Np != N else self.b)
        self._forward = _build_forward(M, K, N, plan)

    def __call__(self, in_data):
        return self._forward(in_data, self.w_pad, self.b_pad)


def _reference(x2d, w_bf16, b_f32):
    # Matches the kernel's numerics: bf16 operands, f32 accumulation.
    return jnp.dot(x2d.astype(jnp.bfloat16), w_bf16,
                   preferred_element_type=jnp.float32) + b_f32


# ----------------------------- tests --------------------------------------- #

if __name__ == "__main__":
    key = jax.random.PRNGKey(0)
    k_in1, k_in2, k_in3, k_p1, k_p2, k_p3 = jax.random.split(key, 6)

    # --- Test 1: original tiny wrapper shape -> resident-weight fast path,
    #     single grid step, no padding, no slicing. ---
    x1 = jax.random.normal(k_in1, (2, 4, 16, 16), jnp.float32)     # 2048 elems
    model1 = BaseModelWrapperPallas((8, 256), 128, k_p1)
    assert model1.plan["fast"]
    out1 = jax.block_until_ready(model1(x1))
    ref1 = _reference(jnp.reshape(x1, (8, 256)), model1.w, model1.b)
    assert out1.shape == (8, 128)
    assert jnp.allclose(out1, ref1, atol=1e-3, rtol=1e-3)

    # --- Test 2: larger stacked shape -> still fast path, but grid=(2,)
    #     so the parallel M axis can shard across v7x's 2 TensorCores. ---
    x2 = jax.random.normal(k_in2, (4, 8, 128, 128), jnp.float32)   # 524288 elems
    model2 = BaseModelWrapperPallas((512, 1024), 256, k_p2)
    assert model2.plan["fast"]
    out2 = jax.block_until_ready(model2(x2))
    ref2 = _reference(jnp.reshape(x2, (512, 1024)), model2.w, model2.b)
    assert out2.shape == (512, 256)
    assert jnp.allclose(out2, ref2, atol=1e-2, rtol=1e-2)

    # --- Test 3: force the K-tiled fallback (small tile caps / zero budget)
    #     to exercise the accumulate-into-output path, bias-init at k==0,
    #     multiple N blocks (bf16 pre-cast) and multiple M/K blocks. ---
    x3 = jax.random.normal(k_in3, (2, 4, 128, 128), jnp.float32)   # 131072 elems
    model3 = BaseModelWrapperPallas((256, 512), 256, k_p3,
                                    tm_max=128, tn_max=128, tk_max=256,
                                    vmem_budget_bytes=0)
    assert not model3.plan["fast"]
    out3 = jax.block_until_ready(model3(x3))
    ref3 = _reference(jnp.reshape(x3, (256, 512)), model3.w, model3.b)
    assert out3.shape == (256, 256)
    assert jnp.allclose(out3, ref3, atol=1e-2, rtol=1e-2)

    print("KERNEL_OK")
</pallas_src>

<mosaic_0001>
module attributes {stable_mosaic.version = 11 : i64} {
  func.func @_linear_resident_kernel(%arg0: i32, %arg1: memref<8x256xf32, #tpu.memory_space<vmem>>, %arg2: memref<256x128xbf16, #tpu.memory_space<vmem>>, %arg3: memref<1x128xf32, #tpu.memory_space<vmem>>, %arg4: memref<8x128xf32, #tpu.memory_space<vmem>>) attributes {dimension_semantics = [#tpu.dimension_semantics<parallel>], iteration_bounds = array<i64: 1>, scalar_prefetch = 0 : i64, scratch_operands = 0 : i64, tpu.core_type = #tpu.core_type<tc>, window_params = [{transform_indices = @transform_0, window_bounds = array<i64: 8, 256>}, {pipeline_mode = #tpu.pipeline_mode<synchronous>, transform_indices = @transform_1, window_bounds = array<i64: 256, 128>}, {pipeline_mode = #tpu.pipeline_mode<synchronous>, transform_indices = @transform_2, window_bounds = array<i64: 1, 128>}, {transform_indices = @transform_3, window_bounds = array<i64: 8, 128>}]} {
    %c0 = arith.constant 0 : index
    %c0_0 = arith.constant 0 : index
    %0 = vector.load %arg1[%c0, %c0_0] : memref<8x256xf32, #tpu.memory_space<vmem>>, vector<8x256xf32>
    %1 = arith.truncf %0 : vector<8x256xf32> to vector<8x256xbf16>
    %c0_1 = arith.constant 0 : index
    %c0_2 = arith.constant 0 : index
    %2 = vector.load %arg2[%c0_1, %c0_2] : memref<256x128xbf16, #tpu.memory_space<vmem>>, vector<256x128xbf16>
    %cst = arith.constant dense<0.000000e+00> : vector<8x128xf32>
    %3 = tpu.matmul %1, %2, %cst {dimension_numbers = #tpu.dot_dimension_numbers<[1], [0], [0], [1], [0, 0, 1, 1], [], []>} : vector<8x256xbf16>, vector<256x128xbf16>, vector<8x128xf32> -> vector<8x128xf32>
    %c0_3 = arith.constant 0 : index
    %c0_4 = arith.constant 0 : index
    %4 = vector.load %arg3[%c0_3, %c0_4] : memref<1x128xf32, #tpu.memory_space<vmem>>, vector<1x128xf32>
    %5 = vector.broadcast %4 : vector<1x128xf32> to vector<8x128xf32>
    %6 = arith.addf %3, %5 : vector<8x128xf32>
    %c0_5 = arith.constant 0 : index
    %c0_6 = arith.constant 0 : index
    %7 = vector.load %arg4[%c0_5, %c0_6] : memref<8x128xf32, #tpu.memory_space<vmem>>, vector<8x128xf32>
    tpu.vector_store %arg4[%c0_5, %c0_6], %6 {strides = array<i32>} : memref<8x128xf32, #tpu.memory_space<vmem>>, vector<8x128xf32>,
    return
  }
  func.func @transform_0(%arg0: i32) -> (i32, i32) {
    %c0_i32 = arith.constant 0 : i32
    %c0_i32_0 = arith.constant 0 : i32
    return %arg0, %c0_i32 : i32, i32
  }
  func.func @transform_1(%arg0: i32) -> (i32, i32) {
    %c0_i32 = arith.constant 0 : i32
    %c0_i32_0 = arith.constant 0 : i32
    %c0_i32_1 = arith.constant 0 : i32
    return %c0_i32, %c0_i32_0 : i32, i32
  }
  func.func @transform_2(%arg0: i32) -> (i32, i32) {
    %c0_i32 = arith.constant 0 : i32
    %c0_i32_0 = arith.constant 0 : i32
    %c0_i32_1 = arith.constant 0 : i32
    return %c0_i32, %c0_i32_0 : i32, i32
  }
  func.func @transform_3(%arg0: i32) -> (i32, i32) {
    %c0_i32 = arith.constant 0 : i32
    %c0_i32_0 = arith.constant 0 : i32
    return %arg0, %c0_i32 : i32, i32
  }
}

</mosaic_0001>

<llo_original>
// kernel: forward.1
$region0: #{forward.1}
  #allocation0 [shape = 'u32[]', space=smem, size = 0x4, offset = 0x4, fixed_abs, tag = 'smem constant byte address 0x4 - core index']
  #allocation1 [shape = 'u32[144,128]{1,0:T(1,128)}', space=vmem, size = 0x12000, scoped, tag = 'internal scratch']
  %s0 = inlined_call_operand.vmem [shape: f32[8,256], index: 0, kind: input, shape index: {}]
  %s1 = inlined_call_operand.vmem [shape: bf16[256,128], index: 1, kind: input, shape index: {}]
  %s2 = inlined_call_operand.vmem [shape: f32[1,128], index: 2, kind: input, shape index: {}]
  %s3 = inlined_call_operand.hbm [shape: f32[8,128], index: 3, kind: output, shape index: {}]
  %s4 = sld [smem:[#allocation0]]
  $region22: #{forward.1} parent=0
    _
  %s6 = ssub.s32 1, %s4
  %s7 = scalar_select 0, %s6, %s4
  $region1: #{forward.1} parent=0
    #allocation2 [shape = 'u8[4096]{0}', space=vmem, size = 0x1000, scoped, tag = 'output window, operand 0, single buffered']
    #allocation3 [shape = 's32[1]{0}', space=sflag, size = 0x4, scoped, tag = 'scoped memory for forward.1']
    %8 = vsyncpa [#allocation3], 0
    // Predicated region
    $region2: #{forward.1} parent=1 // pred_check
      _
    $region3: #{forward.1} parent=1 // pred_check_branch
      %10 = sbr.rel (0) target = $region5
    $region4: #{forward.1} parent=1 // pred_region
      _
    $region5: #{forward.1} parent=1 // pred_fallthru
      _
    // Predicated region
    $region6: #{forward.1} parent=1 // pred_check
      _
    $region7: #{forward.1} parent=1 // pred_check_branch
      %12 = sbr.rel (0) target = $region9
    $region8: #{forward.1} parent=1 // pred_region
      _
    $region9: #{forward.1} parent=1 // pred_fallthru
      _
    // Predicated region
    $region10: #{forward.1} parent=1 // pred_check
      _
    $region11: #{forward.1} parent=1 // pred_check_branch
      %14 = sbr.rel (0) target = $region13
    $region12: #{forward.1} parent=1 // pred_region
      _
    $region13: #{forward.1} parent=1 // pred_fallthru
      _
    %v16 = vld [vmem:[%s0] sm:$0xff]
    %v17 = vld [vmem:[%s0 + $0x8] sm:$0xff]
    %v18 = vpack.c.bf16 %v16, %v16
    %v19 = vpack.c.bf16 %v17, %v17
    %v20 = vld [vmem:[%s1] sm:$0xf]
    %v21 = vld [vmem:[%s1 + $0x4] sm:$0xf]
    %v22 = vld [vmem:[%s1 + $0x8] sm:$0xf]
    %v23 = vld [vmem:[%s1 + $0xc] sm:$0xf]
    %v24 = vld [vmem:[%s1 + $0x10] sm:$0xf]
    %v25 = vld [vmem:[%s1 + $0x14] sm:$0xf]
    %v26 = vld [vmem:[%s1 + $0x18] sm:$0xf]
    %v27 = vld [vmem:[%s1 + $0x1c] sm:$0xf]
    %v28 = vld [vmem:[%s1 + $0x20] sm:$0xf]
    %v29 = vld [vmem:[%s1 + $0x24] sm:$0xf]
    %v30 = vld [vmem:[%s1 + $0x28] sm:$0xf]
    %v31 = vld [vmem:[%s1 + $0x2c] sm:$0xf]
    %v32 = vld [vmem:[%s1 + $0x30] sm:$0xf]
    %v33 = vld [vmem:[%s1 + $0x34] sm:$0xf]
    %v34 = vld [vmem:[%s1 + $0x38] sm:$0xf]
    %v35 = vld [vmem:[%s1 + $0x3c] sm:$0xf]
    %v36 = vld [vmem:[%s1 + $0x40] sm:$0xf]
    %v37 = vld [vmem:[%s1 + $0x44] sm:$0xf]
    %v38 = vld [vmem:[%s1 + $0x48] sm:$0xf]
    %v39 = vld [vmem:[%s1 + $0x4c] sm:$0xf]
    %v40 = vld [vmem:[%s1 + $0x50] sm:$0xf]
    %v41 = vld [vmem:[%s1 + $0x54] sm:$0xf]
    %v42 = vld [vmem:[%s1 + $0x58] sm:$0xf]
    %v43 = vld [vmem:[%s1 + $0x5c] sm:$0xf]
    %v44 = vld [vmem:[%s1 + $0x60] sm:$0xf]
    %v45 = vld [vmem:[%s1 + $0x64] sm:$0xf]
    %v46 = vld [vmem:[%s1 + $0x68] sm:$0xf]
    %v47 = vld [vmem:[%s1 + $0x6c] sm:$0xf]
    %v48 = vld [vmem:[%s1 + $0x70] sm:$0xf]
    %v49 = vld [vmem:[%s1 + $0x74] sm:$0xf]
    %v50 = vld [vmem:[%s1 + $0x78] sm:$0xf]
    %v51 = vld [vmem:[%s1 + $0x7c] sm:$0xf]
    %v52 = vld [vmem:[%s2] sm:$0x1]
    %v54 = vlaneseq
    %v55 = vshrl.u32 %v54, 7
    %v56 = vsub.s32 0, %v55
    %v57 = vrot.slane %v52, %v56
    %v91 = vunpack.c.l.b16 %v20
    %v92 = vunpack.c.l.b16 %v21
    %v93 = vunpack.c.l.b16 %v22
    %v94 = vunpack.c.l.b16 %v23
    %v95 = vunpack.c.l.b16 %v24
    %v96 = vunpack.c.l.b16 %v25
    %v97 = vunpack.c.l.b16 %v26
    %v98 = vunpack.c.l.b16 %v27
    %v99 = vunpack.c.l.b16 %v28
    %v100 = vunpack.c.l.b16 %v29
    %v101 = vunpack.c.l.b16 %v30
    %v102 = vunpack.c.l.b16 %v31
    %v103 = vunpack.c.l.b16 %v32
    %v104 = vunpack.c.l.b16 %v33
    %v105 = vunpack.c.l.b16 %v34
    %v106 = vunpack.c.l.b16 %v35
    %v107 = vunpack.c.l.b16 %v36
    %v108 = vunpack.c.l.b16 %v37
    %v109 = vunpack.c.l.b16 %v38
    %v110 = vunpack.c.l.b16 %v39
    %v111 = vunpack.c.l.b16 %v40
    %v112 = vunpack.c.l.b16 %v41
    %v113 = vunpack.c.l.b16 %v42
    %v114 = vunpack.c.l.b16 %v43
    %v115 = vunpack.c.l.b16 %v44
    %v116 = vunpack.c.l.b16 %v45
    %v117 = vunpack.c.l.b16 %v46
    %v118 = vunpack.c.l.b16 %v47
    %v119 = vunpack.c.l.b16 %v48
    %v120 = vunpack.c.l.b16 %v49
    %v121 = vunpack.c.l.b16 %v50
    %v122 = vunpack.c.l.b16 %v51
    %v123 = vpack.c.b16 %v92, %v91
    %v124 = vpack.c.b16 %v94, %v93
    %v125 = vpack.c.b16 %v96, %v95
    %v126 = vpack.c.b16 %v98, %v97
    %v127 = vpack.c.b16 %v100, %v99
    %v128 = vpack.c.b16 %v102, %v101
    %v129 = vpack.c.b16 %v104, %v103
    %v130 = vpack.c.b16 %v106, %v105
    %v131 = vpack.c.b16 %v108, %v107
    %v132 = vpack.c.b16 %v110, %v109
    %v133 = vpack.c.b16 %v112, %v111
    %v134 = vpack.c.b16 %v114, %v113
    %v135 = vpack.c.b16 %v116, %v115
    %v136 = vpack.c.b16 %v118, %v117
    %v137 = vpack.c.b16 %v120, %v119
    %v138 = vpack.c.b16 %v122, %v121
    %155 = vmatprep.subr.bf16.mxu0 0
    %156 = vmatpush1.bf16.msra.mxu0 %v123
    %157 = vmatprep.subr.bf16.mxu0 0
    %158 = vmatpush1.bf16.msra.mxu0 %v124
    %159 = vmatprep.subr.bf16.mxu0 0
    %160 = vmatpush1.bf16.msra.mxu0 %v125
    %161 = vmatprep.subr.bf16.mxu0 0
    %162 = vmatpush1.bf16.msra.mxu0 %v126
    %163 = vmatprep.subr.bf16.mxu0 0
    %164 = vmatpush1.bf16.msra.mxu0 %v127
    %165 = vmatprep.subr.bf16.mxu0 0
    %166 = vmatpush1.bf16.msra.mxu0 %v128
    %167 = vmatprep.subr.bf16.mxu0 0
    %168 = vmatpush1.bf16.msra.mxu0 %v129
    %169 = vmatprep.subr.bf16.mxu0 0
    %170 = vmatpush1.bf16.msra.mxu0 %v130
    %171 = vmatprep.subr.bf16.mxu0 0
    %172 = vmatpush1.bf16.msra.mxu0 %v131
    %173 = vmatprep.subr.bf16.mxu0 0
    %174 = vmatpush1.bf16.msra.mxu0 %v132
    %175 = vmatprep.subr.bf16.mxu0 0
    %176 = vmatpush1.bf16.msra.mxu0 %v133
    %177 = vmatprep.subr.bf16.mxu0 0
    %178 = vmatpush1.bf16.msra.mxu0 %v134
    %179 = vmatprep.subr.bf16.mxu0 0
    %180 = vmatpush1.bf16.msra.mxu0 %v135
    %181 = vmatprep.subr.bf16.mxu0 0
    %182 = vmatpush1.bf16.msra.mxu0 %v136
    %183 = vmatprep.subr.bf16.mxu0 0
    %184 = vmatpush1.bf16.msra.mxu0 %v137
    %185 = vmatprep.subr.bf16.mxu0 0
    %186 = vmatpush1.bf16.msra.mxu0 %v138
    %187 = vmatprep.mubr.bf16.mxu0 %v19
    %188 = vmatmul.mubr.bf16.gmra.mrb[0].mxu0 %v18
    %v189 = vpop.f32.mrb[0].mxu0
    %v190 = vadd.f32 %v57, %v189
    %v191 = vpop.f32.mrb[0].mxu0
    %v192 = vpop.f32.mrb[0].mxu0
    %v193 = vpop.f32.mrb[0].mxu0
    %194 = vdwg.mxu0
    %195 = vst [vmem:[#allocation2] sm:$0xff] %v190
    // Predicated region
    $region14: #{forward.1} parent=1 // pred_check
      _
    $region15: #{forward.1} parent=1 // pred_check_branch
      %197 = sbr.rel (0) target = $region17
    $region16: #{forward.1} parent=1 // pred_region
      %s199 = ssub.s32 128, 128
      %200 = vsyncadd [#allocation3], %s199
      %s202 = sshll.u32 [#allocation2], 4
      %s203 = int_to_ptr.vmem [resolvable:$true] %s202
      %205 = dma.vmem_to_hbm [thread:$0]  %s203, 128, %s3, [#allocation3]
    $region17: #{forward.1} parent=1 // pred_fallthru
      _
    // Predicated region
    $region18: #{forward.1} parent=1 // pred_check
      _
    $region19: #{forward.1} parent=1 // pred_check_branch
      %207 = sbr.rel (0) target = $region21
    $region20: #{forward.1} parent=1 // pred_region
      %208 = dma.done [#allocation3], 128
    $region21: #{forward.1} parent=1 // pred_fallthru
      _
    %209 = vsyncpa [#allocation3], 1

</llo_original>
